<compile_context>
chip_gen: v7x
topology: tpu7x:2x2x1
jax: 0.10.0
libtpu: 0.0.40
codegen_flags: <defaults>
</compile_context>

<pallas_src>
import functools

import jax
import jax.numpy as jnp
from jax.experimental import pallas as pl
from jax.experimental.pallas import tpu as pltpu


def _round_up(v, m):
    return (v + m - 1) // m * m


# ----------------------------------------------------------------------------
# Kernel: trunk (lin1 -> relu -> lin2 -> relu) + single fused controller matmul
# ----------------------------------------------------------------------------
def _actor_kernel(n_states, n_hidden, r2, r3, x_ref, w_ref, b_ref, out_ref):
    x = x_ref[...]

    # Static slices of the packed weight / bias slabs (compile-time offsets).
    w1 = w_ref[0:n_states, 0:n_hidden]          # [n_states, n_hidden]
    w2 = w_ref[r2:r2 + n_hidden, 0:n_hidden]    # [n_hidden, n_hidden]
    wf = w_ref[r3:r3 + n_hidden, :]             # [n_hidden, wpad] (fused heads)
    b1 = b_ref[0:1, 0:n_hidden]
    b2 = b_ref[1:2, 0:n_hidden]
    bf = b_ref[2:3, :]                          # [1, wpad]

    h = jnp.maximum(jnp.dot(x, w1, preferred_element_type=jnp.float32) + b1, 0.0)
    h = jnp.maximum(jnp.dot(h, w2, preferred_element_type=jnp.float32) + b2, 0.0)

    # One fused matmul for all controllers; padded columns are zero -> tanh(0)=0,
    # sliced away outside the kernel. Full-width (lane-dense) store.
    out_ref[...] = jnp.tanh(
        jnp.dot(h, wf, preferred_element_type=jnp.float32) + bf)


# ----------------------------------------------------------------------------
# One-time parameter packing (fuse controller layers, build 2 slabs)
# ----------------------------------------------------------------------------
def pack_params(params, n_states, n_hidden, controller_conf, controller_list):
    total_actions = sum(controller_conf[n]["actions"] for n in controller_list)
    wpad = _round_up(max(n_hidden, total_actions), 128)

    # Fused controller weights/biases (exact: no ReLU before the shared head).
    wf_cols, bf_cols = [], []
    for i, name in enumerate(controller_list):
        win, bin_ = params[f"Win_{i}"], params[f"bin_{i}"]
        wc, bc = params[f"Wc_{name}"], params[f"bc_{name}"]
        wf_cols.append(win @ wc)            # [n_hidden, actions]
        bf_cols.append(bin_ @ wc + bc)      # [1, actions]
    wf = jnp.concatenate(wf_cols, axis=1)   # [n_hidden, total_actions]
    bf = jnp.concatenate(bf_cols, axis=1)   # [1, total_actions]

    # Row layout of the weight slab (8-row aligned sections).
    r1 = 0
    r2 = _round_up(n_states, 8)
    r3 = r2 + _round_up(n_hidden, 8)
    n_rows = r3 + _round_up(n_hidden, 8)

    w_slab = jnp.zeros((n_rows, wpad), jnp.float32)
    w_slab = w_slab.at[r1:r1 + n_states, :n_hidden].set(params["W1"])
    w_slab = w_slab.at[r2:r2 + n_hidden, :n_hidden].set(params["W2"])
    w_slab = w_slab.at[r3:r3 + n_hidden, :total_actions].set(wf)

    b_slab = jnp.zeros((8, wpad), jnp.float32)
    b_slab = b_slab.at[0:1, :n_hidden].set(params["b1"])
    b_slab = b_slab.at[1:2, :n_hidden].set(params["b2"])
    b_slab = b_slab.at[2:3, :total_actions].set(bf)

    meta = dict(n_states=n_states, n_hidden=n_hidden, total_actions=total_actions,
                wpad=wpad, r2=r2, r3=r3)
    return w_slab, b_slab, meta


# ----------------------------------------------------------------------------
# Wrapper
# ----------------------------------------------------------------------------
def shared_controller_actor_forward(x, w_slab, b_slab, meta, *, block_b=256):
    B = x.shape[0]
    ns, nh = meta["n_states"], meta["n_hidden"]
    wpad, r2, r3 = meta["wpad"], meta["r2"], meta["r3"]
    total_actions = meta["total_actions"]

    kernel = functools.partial(_actor_kernel, ns, nh, r2, r3)

    if B > block_b:
        # Batched path: tile the batch on a "parallel" grid axis (megacore on v7x).
        Bp = _round_up(B, block_b)
        if Bp != B:
            x = jnp.pad(x, ((0, Bp - B), (0, 0)))
        out = pl.pallas_call(
            kernel,
            out_shape=jax.ShapeDtypeStruct((Bp, wpad), jnp.float32),
            grid=(Bp // block_b,),
            in_specs=[
                pl.BlockSpec((block_b, ns), lambda i: (i, 0)),
                pl.BlockSpec(w_slab.shape, lambda i: (0, 0)),   # resident weights
                pl.BlockSpec(b_slab.shape, lambda i: (0, 0)),   # resident biases
            ],
            out_specs=pl.BlockSpec((block_b, wpad), lambda i: (i, 0)),
            compiler_params=pltpu.CompilerParams(
                dimension_semantics=("parallel",)),
        )(x, w_slab, b_slab)
        return out[:B, :total_actions]

    # Small-batch path: no grid, whole operands resident in VMEM (3 DMAs total).
    out = pl.pallas_call(
        kernel,
        out_shape=jax.ShapeDtypeStruct((B, wpad), jnp.float32),
        in_specs=[pl.BlockSpec(memory_space=pltpu.MemorySpace.VMEM)] * 3,
        out_specs=pl.BlockSpec(memory_space=pltpu.MemorySpace.VMEM),
    )(x, w_slab, b_slab)
    return out[:, :total_actions]


# ----------------------------------------------------------------------------
# Deterministic parameter construction (xavier_uniform weights, uniform biases)
# ----------------------------------------------------------------------------
def _xavier_uniform(key, fan_in, fan_out):
    limit = (6.0 / (fan_in + fan_out)) ** 0.5
    return jax.random.uniform(key, (fan_in, fan_out), jnp.float32, -limit, limit)


def _bias(key, fan_in, fan_out):
    bound = 1.0 / (fan_in ** 0.5)
    return jax.random.uniform(key, (1, fan_out), jnp.float32, -bound, bound)


def make_params(key, n_states, n_hidden, controller_conf, controller_list):
    params = {}
    keys = jax.random.split(key, 4 + 2 * len(controller_list) + 2 * len(controller_conf))
    k = iter(keys)

    params["W1"] = _xavier_uniform(next(k), n_states, n_hidden)
    params["b1"] = _bias(next(k), n_states, n_hidden)
    params["W2"] = _xavier_uniform(next(k), n_hidden, n_hidden)
    params["b2"] = _bias(next(k), n_hidden, n_hidden)

    for i, name in enumerate(controller_list):
        h = controller_conf[name]["hidden"]
        params[f"Win_{i}"] = _xavier_uniform(next(k), n_hidden, h)
        params[f"bin_{i}"] = _bias(next(k), n_hidden, h)

    for name, conf in controller_conf.items():
        h, a = conf["hidden"], conf["actions"]
        params[f"Wc_{name}"] = _xavier_uniform(next(k), h, a)
        params[f"bc_{name}"] = _bias(next(k), h, a)

    return params


# ----------------------------------------------------------------------------
# Pure-JAX reference (un-fused, mirrors the PyTorch forward exactly)
# ----------------------------------------------------------------------------
def reference_forward(x, params, controller_conf, controller_list):
    h = jnp.maximum(x @ params["W1"] + params["b1"], 0.0)
    h = jnp.maximum(h @ params["W2"] + params["b2"], 0.0)
    outs = []
    for i, name in enumerate(controller_list):
        xc = h @ params[f"Win_{i}"] + params[f"bin_{i}"]
        # (original code computes relu(xc) but discards it; the head sees xc)
        outs.append(xc @ params[f"Wc_{name}"] + params[f"bc_{name}"])
    return jnp.tanh(jnp.concatenate(outs, axis=1))


# ----------------------------------------------------------------------------
if __name__ == "__main__":
    B = 2
    n_states = 8
    n_hidden = 32
    controller_conf = {
        "arm": {"actions": 3, "hidden": 16},
        "leg": {"actions": 4, "hidden": 16},
    }
    controller_list = ["arm", "arm", "leg", "leg"]
    total_actions = sum(controller_conf[n]["actions"] for n in controller_list)

    key = jax.random.PRNGKey(0)
    kx, kp, kx2 = jax.random.split(key, 3)
    x = jax.random.normal(kx, (B, n_states), jnp.float32)
    params = make_params(kp, n_states, n_hidden, controller_conf, controller_list)

    # One-time fusion + slab packing.
    w_slab, b_slab, meta = pack_params(
        params, n_states, n_hidden, controller_conf, controller_list)

    # Small-batch (gridless, whole-VMEM) path.
    out = shared_controller_actor_forward(x, w_slab, b_slab, meta)
    out = jax.block_until_ready(out)
    ref = reference_forward(x, params, controller_conf, controller_list)
    assert out.shape == (B, total_actions)
    assert jnp.allclose(out, ref, atol=1e-5, rtol=1e-5), "small-batch mismatch vs reference"

    # Batched path (grid over batch, 'parallel' axis -> both TCs on v7x).
    Bb = 512
    xb = jax.random.normal(kx2, (Bb, n_states), jnp.float32)
    outb = jax.block_until_ready(
        shared_controller_actor_forward(xb, w_slab, b_slab, meta))
    refb = reference_forward(xb, params, controller_conf, controller_list)
    assert outb.shape == (Bb, total_actions)
    assert jnp.allclose(outb, refb, atol=1e-5, rtol=1e-5), "batched mismatch vs reference"

    print("KERNEL_OK")
</pallas_src>

<mosaic_0001>
module attributes {stable_mosaic.version = 11 : i64} {
  func.func @_actor_kernel(%arg0: memref<2x8xf32, #tpu.memory_space<vmem>>, %arg1: memref<72x128xf32, #tpu.memory_space<vmem>>, %arg2: memref<8x128xf32, #tpu.memory_space<vmem>>, %arg3: memref<2x128xf32, #tpu.memory_space<vmem>>) attributes {dimension_semantics = [], scalar_prefetch = 0 : i64, scratch_operands = 0 : i64, tpu.core_type = #tpu.core_type<tc>} {
    %c0 = arith.constant 0 : index
    %c0_0 = arith.constant 0 : index
    %0 = vector.load %arg0[%c0, %c0_0] : memref<2x8xf32, #tpu.memory_space<vmem>>, vector<2x8xf32>
    %c0_1 = arith.constant 0 : index
    %c0_2 = arith.constant 0 : index
    %1 = vector.load %arg1[%c0_1, %c0_2] : memref<72x128xf32, #tpu.memory_space<vmem>>, vector<8x32xf32>
    %c8 = arith.constant 8 : index
    %c0_3 = arith.constant 0 : index
    %2 = vector.load %arg1[%c8, %c0_3] : memref<72x128xf32, #tpu.memory_space<vmem>>, vector<32x32xf32>
    %c40 = arith.constant 40 : index
    %c0_4 = arith.constant 0 : index
    %3 = vector.load %arg1[%c40, %c0_4] : memref<72x128xf32, #tpu.memory_space<vmem>>, vector<32x128xf32>
    %c0_5 = arith.constant 0 : index
    %c0_6 = arith.constant 0 : index
    %4 = vector.load %arg2[%c0_5, %c0_6] : memref<8x128xf32, #tpu.memory_space<vmem>>, vector<1x32xf32>
    %c1 = arith.constant 1 : index
    %c0_7 = arith.constant 0 : index
    %5 = vector.load %arg2[%c1, %c0_7] : memref<8x128xf32, #tpu.memory_space<vmem>>, vector<1x32xf32>
    %c2 = arith.constant 2 : index
    %c0_8 = arith.constant 0 : index
    %6 = vector.load %arg2[%c2, %c0_8] : memref<8x128xf32, #tpu.memory_space<vmem>>, vector<1x128xf32>
    %cst = arith.constant dense<0.000000e+00> : vector<2x32xf32>
    %7 = tpu.matmul %0, %1, %cst {dimension_numbers = #tpu.dot_dimension_numbers<[1], [0], [0], [1], [0, 0, 1, 1], [], []>} : vector<2x8xf32>, vector<8x32xf32>, vector<2x32xf32> -> vector<2x32xf32>
    %8 = vector.broadcast %4 : vector<1x32xf32> to vector<2x32xf32>
    %9 = arith.addf %7, %8 : vector<2x32xf32>
    %cst_9 = arith.constant 0.000000e+00 : f32
    %10 = vector.broadcast %cst_9 : f32 to vector<2x32xf32>
    %11 = arith.maximumf %9, %10 : vector<2x32xf32>
    %cst_10 = arith.constant dense<0.000000e+00> : vector<2x32xf32>
    %12 = tpu.matmul %11, %2, %cst_10 {dimension_numbers = #tpu.dot_dimension_numbers<[1], [0], [0], [1], [0, 0, 1, 1], [], []>} : vector<2x32xf32>, vector<32x32xf32>, vector<2x32xf32> -> vector<2x32xf32>
    %13 = vector.broadcast %5 : vector<1x32xf32> to vector<2x32xf32>
    %14 = arith.addf %12, %13 : vector<2x32xf32>
    %cst_11 = arith.constant 0.000000e+00 : f32
    %15 = vector.broadcast %cst_11 : f32 to vector<2x32xf32>
    %16 = arith.maximumf %14, %15 : vector<2x32xf32>
    %cst_12 = arith.constant dense<0.000000e+00> : vector<2x128xf32>
    %17 = tpu.matmul %16, %3, %cst_12 {dimension_numbers = #tpu.dot_dimension_numbers<[1], [0], [0], [1], [0, 0, 1, 1], [], []>} : vector<2x32xf32>, vector<32x128xf32>, vector<2x128xf32> -> vector<2x128xf32>
    %18 = vector.broadcast %6 : vector<1x128xf32> to vector<2x128xf32>
    %19 = arith.addf %17, %18 : vector<2x128xf32>
    %20 = math.tanh %19 : vector<2x128xf32>
    %c0_13 = arith.constant 0 : index
    %c0_14 = arith.constant 0 : index
    %21 = vector.load %arg3[%c0_13, %c0_14] : memref<2x128xf32, #tpu.memory_space<vmem>>, vector<2x128xf32>
    tpu.vector_store %arg3[%c0_13, %c0_14], %20 {strides = array<i32>} : memref<2x128xf32, #tpu.memory_space<vmem>>, vector<2x128xf32>,
    return
  }
}

</mosaic_0001>

<llo_original>
// kernel: tpu_custom_call.1
$region0: #{tpu_custom_call.1}
  #allocation0 [shape = 'u32[]', space=smem, size = 0x4, offset = 0x4, fixed_abs, tag = 'smem constant byte address 0x4 - core index']
  #allocation1 [shape = 'u32[144,128]{1,0:T(1,128)}', space=vmem, size = 0x12000, scoped, tag = 'internal scratch']
  %s0 = inlined_call_operand.hbm [shape: f32[2,8], index: 0, kind: input, shape index: {}]
  %s1 = inlined_call_operand.hbm [shape: f32[72,128], index: 1, kind: input, shape index: {}]
  %s2 = inlined_call_operand.hbm [shape: f32[8,128], index: 2, kind: input, shape index: {}]
  %s3 = inlined_call_operand.hbm [shape: f32[2,128], index: 3, kind: output, shape index: {}]
  %s4 = sld [smem:[#allocation0]]
  $region34: #{tpu_custom_call.1} parent=0
    _
  %s6 = ssub.s32 1, %s4
  %s7 = scalar_select 0, %s6, %s4
  $region1: #{tpu_custom_call.1} parent=0
    #allocation2 [shape = 'u8[1024]{0}', space=vmem, size = 0x400, scoped, tag = 'input window, operand 0, single buffered']
    #allocation3 [shape = 's32[1]{0}', space=sflag, size = 0x4, scoped, tag = 'scoped memory for tpu_custom_call.1']
    #allocation4 [shape = 's32[1]{0}', space=sflag, size = 0x4, scoped, tag = 'scoped memory for tpu_custom_call.1']
    #allocation5 [shape = 'u8[36864]{0}', space=vmem, size = 0x9000, scoped, tag = 'input window, operand 1, single buffered']
    #allocation6 [shape = 's32[1]{0}', space=sflag, size = 0x4, scoped, tag = 'scoped memory for tpu_custom_call.1']
    #allocation7 [shape = 'u8[4096]{0}', space=vmem, size = 0x1000, scoped, tag = 'input window, operand 2, single buffered']
    #allocation8 [shape = 'u8[1024]{0}', space=vmem, size = 0x400, scoped, tag = 'output window, operand 0, single buffered']
    %8 = vsyncpa [#allocation3], 0
    %9 = vsyncpa [#allocation6], 0
    %10 = vsyncpa [#allocation4], 0
    // Predicated region
    $region2: #{tpu_custom_call.1} parent=1 // pred_check
      _
    $region3: #{tpu_custom_call.1} parent=1 // pred_check_branch
      %12 = sbr.rel (0) target = $region5
    $region4: #{tpu_custom_call.1} parent=1 // pred_region
      %s14 = ssub.s32 32, 32
      %15 = vsyncadd [#allocation3], %s14
      %s17 = sshll.u32 [#allocation2], 4
      %s18 = int_to_ptr.vmem [resolvable:$true] %s17
      %20 = dma.hbm_to_vmem [thread:$0]  %s0, 32, %s18, [#allocation3]
    $region5: #{tpu_custom_call.1} parent=1 // pred_fallthru
      _
    // Predicated region
    $region6: #{tpu_custom_call.1} parent=1 // pred_check
      _
    $region7: #{tpu_custom_call.1} parent=1 // pred_check_branch
      %22 = sbr.rel (0) target = $region9
    $region8: #{tpu_custom_call.1} parent=1 // pred_region
      %s24 = ssub.s32 1152, 1152
      %25 = vsyncadd [#allocation6], %s24
      %s26 = sshll.u32 [#allocation5], 4
      %s27 = int_to_ptr.vmem [resolvable:$true] %s26
      %32 = dma.hbm_to_vmem [thread:$0]  %s1, 1152, %s27, [#allocation6], 128, 128, 8
    $region9: #{tpu_custom_call.1} parent=1 // pred_fallthru
      _
    // Predicated region
    $region10: #{tpu_custom_call.1} parent=1 // pred_check
      _
    $region11: #{tpu_custom_call.1} parent=1 // pred_check_branch
      %34 = sbr.rel (0) target = $region13
    $region12: #{tpu_custom_call.1} parent=1 // pred_region
      %s36 = ssub.s32 128, 128
      %37 = vsyncadd [#allocation6], %s36
      %s39 = sshll.u32 [#allocation7], 4
      %s40 = int_to_ptr.vmem [resolvable:$true] %s39
      %42 = dma.hbm_to_vmem [thread:$0]  %s2, 128, %s40, [#allocation6]
    $region13: #{tpu_custom_call.1} parent=1 // pred_fallthru
      _
    // Predicated region
    $region14: #{tpu_custom_call.1} parent=1 // pred_check
      _
    $region15: #{tpu_custom_call.1} parent=1 // pred_check_branch
      %44 = sbr.rel (0) target = $region17
    $region16: #{tpu_custom_call.1} parent=1 // pred_region
      %45 = dma.done [#allocation3], 32
    $region17: #{tpu_custom_call.1} parent=1 // pred_fallthru
      _
    // Predicated region
    $region18: #{tpu_custom_call.1} parent=1 // pred_check
      _
    $region19: #{tpu_custom_call.1} parent=1 // pred_check_branch
      %47 = sbr.rel (0) target = $region21
    $region20: #{tpu_custom_call.1} parent=1 // pred_region
      %48 = dma.done [#allocation6], 1152
    $region21: #{tpu_custom_call.1} parent=1 // pred_fallthru
      _
    // Predicated region
    $region22: #{tpu_custom_call.1} parent=1 // pred_check
      _
    $region23: #{tpu_custom_call.1} parent=1 // pred_check_branch
      %50 = sbr.rel (0) target = $region25
    $region24: #{tpu_custom_call.1} parent=1 // pred_region
      %51 = dma.done [#allocation6], 128
    $region25: #{tpu_custom_call.1} parent=1 // pred_fallthru
      _
    %v52 = vld [vmem:[#allocation2] sm:$0x3]
    %v53 = vld [vmem:[#allocation5] sm:$0xff]
    %v54 = vld [vmem:[#allocation5 + $0x8] sm:$0xff]
    %v55 = vld [vmem:[#allocation5 + $0x10] sm:$0xff]
    %v56 = vld [vmem:[#allocation5 + $0x18] sm:$0xff]
    %v57 = vld [vmem:[#allocation5 + $0x20] sm:$0xff]
    %v58 = vld [vmem:[#allocation5 + $0x28] sm:$0xff]
    %v59 = vld [vmem:[#allocation5 + $0x30] sm:$0xff]
    %v60 = vld [vmem:[#allocation5 + $0x38] sm:$0xff]
    %v61 = vld [vmem:[#allocation5 + $0x40] sm:$0xff]
    %v62 = vld [vmem:[#allocation7] sm:$0x1]
    %v63 = vld [vmem:[#allocation7 + $0x1] sm:$0x1]
    %v64 = vld [vmem:[#allocation7 + $0x2] sm:$0x1]
    %v65 = vlaneseq
    %v66 = vshrl.u32 %v65, 7
    %v67 = vsub.s32 0, %v66
    %v68 = vrot.slane %v62, %v67
    %vm69 = vcmask 64512
    %v71 = vsel %vm69, %v52, 0
    %73 = vmatprep.subr.mxu0 0.0
    %74 = vmatpush1.msra.mxu0 %v53
    %75 = vmatprep.subr.mxu0 0.0
    %76 = vmatpush1.msra.mxu0 0.0
    %77 = vmatprep.subr.mxu0 0.0
    %78 = vmatpush1.msra.mxu0 0.0
    %79 = vmatprep.subr.mxu0 0.0
    %80 = vmatpush1.msra.mxu0 0.0
    %81 = vmatprep.subr.mxu0 0.0
    %82 = vmatpush1.msra.mxu0 0.0
    %83 = vmatprep.subr.mxu0 0.0
    %84 = vmatpush1.msra.mxu0 0.0
    %85 = vmatprep.subr.mxu0 0.0
    %86 = vmatpush1.msra.mxu0 0.0
    %87 = vmatprep.subr.mxu0 0.0
    %88 = vmatpush1.msra.mxu0 0.0
    %89 = vmatprep.subr.mxu0 0.0
    %90 = vmatpush1.msra.mxu0 0.0
    %91 = vmatprep.subr.mxu0 0.0
    %92 = vmatpush1.msra.mxu0 0.0
    %93 = vmatprep.subr.mxu0 0.0
    %94 = vmatpush1.msra.mxu0 0.0
    %95 = vmatprep.subr.mxu0 0.0
    %96 = vmatpush1.msra.mxu0 0.0
    %97 = vmatprep.subr.mxu0 0.0
    %98 = vmatpush1.msra.mxu0 0.0
    %99 = vmatprep.subr.mxu0 0.0
    %100 = vmatpush1.msra.mxu0 0.0
    %101 = vmatprep.subr.mxu0 0.0
    %102 = vmatpush1.msra.mxu0 0.0
    %103 = vmatprep.subr.mxu0 0.0
    %104 = vmatpush1.msra.mxu0 0.0
    %105 = vmatprep.subr.mxu0 0.0
    %106 = vmatpush1.msra.mxu0 0.0
    %107 = vmatprep.subr.mxu0 0.0
    %108 = vmatpush1.msra.mxu0 0.0
    %109 = vmatprep.subr.mxu0 0.0
    %110 = vmatpush1.msra.mxu0 0.0
    %111 = vmatprep.subr.mxu0 0.0
    %112 = vmatpush1.msra.mxu0 0.0
    %113 = vmatprep.subr.mxu0 0.0
    %114 = vmatpush1.msra.mxu0 0.0
    %115 = vmatprep.subr.mxu0 0.0
    %116 = vmatpush1.msra.mxu0 0.0
    %117 = vmatprep.subr.mxu0 0.0
    %118 = vmatpush1.msra.mxu0 0.0
    %119 = vmatprep.subr.mxu0 0.0
    %120 = vmatpush1.msra.mxu0 0.0
    %121 = vmatprep.subr.mxu0 0.0
    %122 = vmatpush1.msra.mxu0 0.0
    %123 = vmatprep.subr.mxu0 0.0
    %124 = vmatpush1.msra.mxu0 0.0
    %125 = vmatprep.subr.mxu0 0.0
    %126 = vmatpush1.msra.mxu0 0.0
    %127 = vmatprep.subr.mxu0 0.0
    %128 = vmatpush1.msra.mxu0 0.0
    %129 = vmatprep.subr.mxu0 0.0
    %130 = vmatpush1.msra.mxu0 0.0
    %131 = vmatprep.subr.mxu0 0.0
    %132 = vmatpush1.msra.mxu0 0.0
    %133 = vmatprep.subr.mxu0 0.0
    %134 = vmatpush1.msra.mxu0 0.0
    %135 = vmatprep.subr.mxu0 0.0
    %136 = vmatpush1.msra.mxu0 0.0
    %137 = vmatprep.mubr.f32.mxu0 0.0
    %138 = vmatmul.mubr.f32.gmra.mrb[0].mxu0 %v71
    %v139 = vpop.f32.mrb[0].mxu0
    %v140 = vadd.f32 %v68, %v139
    %v141 = vpop.f32.mrb[0].mxu0
    %142 = vdwg.mxu0
    %v143 = vmax.f32 %v140, 0.0
    %v144 = vlaneseq
    %v145 = vshrl.u32 %v144, 7
    %v146 = vsub.s32 0, %v145
    %v147 = vrot.slane %v63, %v146
    %vm148 = vcmask 261120
    %v150 = vsel %vm148, %v143, 0
    %152 = vmatprep.subr.mxu0 0.0
    %153 = vmatpush1.msra.mxu0 %v54
    %154 = vmatprep.subr.mxu0 0.0
    %155 = vmatpush1.msra.mxu0 %v55
    %156 = vmatprep.subr.mxu0 0.0
    %157 = vmatpush1.msra.mxu0 %v56
    %158 = vmatprep.subr.mxu0 0.0
    %159 = vmatpush1.msra.mxu0 %v57
    %160 = vmatprep.subr.mxu0 0.0
    %161 = vmatpush1.msra.mxu0 0.0
    %162 = vmatprep.subr.mxu0 0.0
    %163 = vmatpush1.msra.mxu0 0.0
    %164 = vmatprep.subr.mxu0 0.0
    %165 = vmatpush1.msra.mxu0 0.0
    %166 = vmatprep.subr.mxu0 0.0
    %167 = vmatpush1.msra.mxu0 0.0
    %168 = vmatprep.subr.mxu0 0.0
    %169 = vmatpush1.msra.mxu0 0.0
    %170 = vmatprep.subr.mxu0 0.0
    %171 = vmatpush1.msra.mxu0 0.0
    %172 = vmatprep.subr.mxu0 0.0
    %173 = vmatpush1.msra.mxu0 0.0
    %174 = vmatprep.subr.mxu0 0.0
    %175 = vmatpush1.msra.mxu0 0.0
    %176 = vmatprep.subr.mxu0 0.0
    %177 = vmatpush1.msra.mxu0 0.0
    %178 = vmatprep.subr.mxu0 0.0
    %179 = vmatpush1.msra.mxu0 0.0
    %180 = vmatprep.subr.mxu0 0.0
    %181 = vmatpush1.msra.mxu0 0.0
    %182 = vmatprep.subr.mxu0 0.0
    %183 = vmatpush1.msra.mxu0 0.0
    %184 = vmatprep.subr.mxu0 0.0
    %185 = vmatpush1.msra.mxu0 0.0
    %186 = vmatprep.subr.mxu0 0.0
    %187 = vmatpush1.msra.mxu0 0.0
    %188 = vmatprep.subr.mxu0 0.0
    %189 = vmatpush1.msra.mxu0 0.0
    %190 = vmatprep.subr.mxu0 0.0
    %191 = vmatpush1.msra.mxu0 0.0
    %192 = vmatprep.subr.mxu0 0.0
    %193 = vmatpush1.msra.mxu0 0.0
    %194 = vmatprep.subr.mxu0 0.0
    %195 = vmatpush1.msra.mxu0 0.0
    %196 = vmatprep.subr.mxu0 0.0
    %197 = vmatpush1.msra.mxu0 0.0
    %198 = vmatprep.subr.mxu0 0.0
    %199 = vmatpush1.msra.mxu0 0.0
    %200 = vmatprep.subr.mxu0 0.0
    %201 = vmatpush1.msra.mxu0 0.0
    %202 = vmatprep.subr.mxu0 0.0
    %203 = vmatpush1.msra.mxu0 0.0
    %204 = vmatprep.subr.mxu0 0.0
    %205 = vmatpush1.msra.mxu0 0.0
    %206 = vmatprep.subr.mxu0 0.0
    %207 = vmatpush1.msra.mxu0 0.0
    %208 = vmatprep.subr.mxu0 0.0
    %209 = vmatpush1.msra.mxu0 0.0
    %210 = vmatprep.subr.mxu0 0.0
    %211 = vmatpush1.msra.mxu0 0.0
    %212 = vmatprep.subr.mxu0 0.0
    %213 = vmatpush1.msra.mxu0 0.0
    %214 = vmatprep.subr.mxu0 0.0
    %215 = vmatpush1.msra.mxu0 0.0
    %216 = vmatprep.mubr.f32.mxu0 0.0
    %217 = vmatmul.mubr.f32.gmra.mrb[0].mxu0 %v150
    %v218 = vpop.f32.mrb[0].mxu0
    %v219 = vadd.f32 %v147, %v218
    %v220 = vpop.f32.mrb[0].mxu0
    %221 = vdwg.mxu0
    %v222 = vmax.f32 %v219, 0.0
    %v223 = vlaneseq
    %v224 = vshrl.u32 %v223, 7
    %v225 = vsub.s32 0, %v224
    %v226 = vrot.slane %v64, %v225
    %v228 = vsel %vm148, %v222, 0
    %230 = vmatprep.subr.mxu0 0.0
    %231 = vmatpush1.msra.mxu0 %v58
    %232 = vmatprep.subr.mxu0 0.0
    %233 = vmatpush1.msra.mxu0 %v59
    %234 = vmatprep.subr.mxu0 0.0
    %235 = vmatpush1.msra.mxu0 %v60
    %236 = vmatprep.subr.mxu0 0.0
    %237 = vmatpush1.msra.mxu0 %v61
    %238 = vmatprep.subr.mxu0 0.0
    %239 = vmatpush1.msra.mxu0 0.0
    %240 = vmatprep.subr.mxu0 0.0
    %241 = vmatpush1.msra.mxu0 0.0
    %242 = vmatprep.subr.mxu0 0.0
    %243 = vmatpush1.msra.mxu0 0.0
    %244 = vmatprep.subr.mxu0 0.0
    %245 = vmatpush1.msra.mxu0 0.0
    %246 = vmatprep.subr.mxu0 0.0
    %247 = vmatpush1.msra.mxu0 0.0
    %248 = vmatprep.subr.mxu0 0.0
    %249 = vmatpush1.msra.mxu0 0.0
    %250 = vmatprep.subr.mxu0 0.0
    %251 = vmatpush1.msra.mxu0 0.0
    %252 = vmatprep.subr.mxu0 0.0
    %253 = vmatpush1.msra.mxu0 0.0
    %254 = vmatprep.subr.mxu0 0.0
    %255 = vmatpush1.msra.mxu0 0.0
    %256 = vmatprep.subr.mxu0 0.0
    %257 = vmatpush1.msra.mxu0 0.0
    %258 = vmatprep.subr.mxu0 0.0
    %259 = vmatpush1.msra.mxu0 0.0
    %260 = vmatprep.subr.mxu0 0.0
    %261 = vmatpush1.msra.mxu0 0.0
    %262 = vmatprep.subr.mxu0 0.0
    %263 = vmatpush1.msra.mxu0 0.0
    %264 = vmatprep.subr.mxu0 0.0
    %265 = vmatpush1.msra.mxu0 0.0
    %266 = vmatprep.subr.mxu0 0.0
    %267 = vmatpush1.msra.mxu0 0.0
    %268 = vmatprep.subr.mxu0 0.0
    %269 = vmatpush1.msra.mxu0 0.0
    %270 = vmatprep.subr.mxu0 0.0
    %271 = vmatpush1.msra.mxu0 0.0
    %272 = vmatprep.subr.mxu0 0.0
    %273 = vmatpush1.msra.mxu0 0.0
    %274 = vmatprep.subr.mxu0 0.0
    %275 = vmatpush1.msra.mxu0 0.0
    %276 = vmatprep.subr.mxu0 0.0
    %277 = vmatpush1.msra.mxu0 0.0
    %278 = vmatprep.subr.mxu0 0.0
    %279 = vmatpush1.msra.mxu0 0.0
    %280 = vmatprep.subr.mxu0 0.0
    %281 = vmatpush1.msra.mxu0 0.0
    %282 = vmatprep.subr.mxu0 0.0
    %283 = vmatpush1.msra.mxu0 0.0
    %284 = vmatprep.subr.mxu0 0.0
    %285 = vmatpush1.msra.mxu0 0.0
    %286 = vmatprep.subr.mxu0 0.0
    %287 = vmatpush1.msra.mxu0 0.0
    %288 = vmatprep.subr.mxu0 0.0
    %289 = vmatpush1.msra.mxu0 0.0
    %290 = vmatprep.subr.mxu0 0.0
    %291 = vmatpush1.msra.mxu0 0.0
    %292 = vmatprep.subr.mxu0 0.0
    %293 = vmatpush1.msra.mxu0 0.0
    %294 = vmatprep.mubr.f32.mxu0 0.0
    %295 = vmatmul.mubr.f32.gmra.mrb[0].mxu0 %v228
    %v296 = vpop.f32.mrb[0].mxu0
    %v297 = vadd.f32 %v226, %v296
    %v298 = vpop.f32.mrb[0].mxu0
    %299 = vdwg.mxu0
    %v300 = vtanh.pop %v297
    %301 = vst [vmem:[#allocation8] sm:$0x3] %v300
    // Predicated region
    $region26: #{tpu_custom_call.1} parent=1 // pred_check
      _
    $region27: #{tpu_custom_call.1} parent=1 // pred_check_branch
      %303 = sbr.rel (0) target = $region29
    $region28: #{tpu_custom_call.1} parent=1 // pred_region
      %s305 = ssub.s32 32, 32
      %306 = vsyncadd [#allocation4], %s305
      %s308 = sshll.u32 [#allocation8], 4
      %s309 = int_to_ptr.vmem [resolvable:$true] %s308
      %311 = dma.vmem_to_hbm [thread:$0]  %s309, 32, %s3, [#allocation4]
    $region29: #{tpu_custom_call.1} parent=1 // pred_fallthru
      _
    // Predicated region
    $region30: #{tpu_custom_call.1} parent=1 // pred_check
      _
    $region31: #{tpu_custom_call.1} parent=1 // pred_check_branch
      %313 = sbr.rel (0) target = $region33
    $region32: #{tpu_custom_call.1} parent=1 // pred_region
      %314 = dma.done [#allocation4], 32
    $region33: #{tpu_custom_call.1} parent=1 // pred_fallthru
      _
    %315 = vsyncpa [#allocation3], 1
    %316 = vsyncpa [#allocation6], 1
    %317 = vsyncpa [#allocation4], 1

</llo_original>
